<compile_context>
chip_gen: v6e
topology: v6e:2x2x1
jax: 0.10.0
libtpu: 0.0.40
codegen_flags: <defaults>
</compile_context>

<pallas_src>
import functools

import jax
import jax.numpy as jnp
from jax.experimental import pallas as pl
from jax.experimental.pallas import tpu as pltpu


def _round_up(x, m):
    return -(-x // m) * m


# ---------------------------------------------------------------------------
# Kernel: trunk MLP (lane-dense, transposed) + combine with precomputed branch.
# ---------------------------------------------------------------------------
def deeponet_kernel(width, rw, rp, depth,
                    bro_ref, xt_ref, wt_ref, cols_ref, bias_ref, out_ref):
    f32 = jnp.float32

    cols = cols_ref[...]                 # (rc, depth+1): [tw0 | tb0 | tb_h.. | tb_f] columns
    xt = xt_ref[...]                     # (1, tn) trunk coordinates for this tile

    # --- trunk layer 0 (n_trunk == 1): VPU broadcast multiply, no MXU ---
    tw0 = cols[0:width, 0:1]             # (width, 1)
    tb0 = cols[0:width, 1:2]             # (width, 1)
    t = jnp.tanh(tw0 * xt + tb0)         # (width, tn), fully lane-dense

    # --- hidden trunk layers (depth - 2), weights packed transposed ---
    for li in range(depth - 2):
        w = wt_ref[li * rw: li * rw + width, :]          # (width, width) == W_i^T
        b = cols[0:width, 2 + li: 3 + li]                # (width, 1)
        t = jnp.tanh(jnp.dot(w, t, preferred_element_type=f32) + b)

    # --- final trunk layer + ReLU (final_act=True), rows padded to rp ---
    off = (depth - 2) * rw
    wf = wt_ref[off: off + rp, :]                        # (rp, width) == W_f^T (zero-padded rows)
    bf = cols[0:rp, depth: depth + 1]                    # (rp, 1)
    t = jnp.maximum(jnp.dot(wf, t, preferred_element_type=f32) + bf, 0.0)   # (rp, tn)

    # --- combine: branch_out @ trunk_out^T in native A @ B orientation ---
    out = jnp.dot(bro_ref[...], t, preferred_element_type=f32)              # (B_b, tn)
    out_ref[...] = (out + bias_ref[0, 0]).astype(out_ref.dtype)


# ---------------------------------------------------------------------------
# Parameter packing (transposed trunk weights, sublane-aligned segments).
# ---------------------------------------------------------------------------
def pack_trunk_params(trunk_layers, width, p, depth):
    rw = _round_up(width, 8)
    rp = _round_up(p, 8)
    rc = max(rw, rp)

    def pad_rows(a, rows):
        return jnp.pad(a, ((0, rows - a.shape[0]), (0, 0)))

    W0, b0 = trunk_layers[0]                      # (1, width), (1, width)
    cols = [pad_rows(W0.T, rc), pad_rows(b0.T, rc)]

    wt_segs = []
    for li in range(1, depth - 1):                # hidden layers
        Wi, bi = trunk_layers[li]                 # (width, width), (1, width)
        wt_segs.append(pad_rows(Wi.T, rw))
        cols.append(pad_rows(bi.T, rc))

    Wf, bf = trunk_layers[depth - 1]              # (width, p), (1, p)
    wt_segs.append(pad_rows(Wf.T, rp))
    cols.append(pad_rows(bf.T, rc))

    wt = jnp.concatenate(wt_segs, axis=0).astype(jnp.float32)   # ((depth-2)*rw + rp, width)
    cols = jnp.concatenate(cols, axis=1).astype(jnp.float32)    # (rc, depth + 1)
    return wt, cols, rw, rp


def branch_forward(x, branch_layers):
    """Grid-invariant branch MLP, hoisted to the wrapper (plain XLA)."""
    h = x
    for W, b in branch_layers[:-1]:
        h = jnp.tanh(h @ W + b)
    W, b = branch_layers[-1]
    return h @ W + b                              # (B_b, p), no final activation


def _trunk_tiling(B_t, max_tn=1024):
    """Pick (tn, B_t_padded): tn a multiple of 128 (unmasked lane-dense stores),
    ~B_t/2 so a 2-step grid shards across v7x's two TCs, capped so big batches
    still amortize per-step overhead on v5e/v6e without huge live values."""
    bt128 = _round_up(B_t, 128)
    if bt128 <= 128:
        return 128, 128
    tn = min(max_tn, _round_up(bt128 // 2, 128))
    return tn, _round_up(B_t, tn)


# ---------------------------------------------------------------------------
# Forward wrapper.
# ---------------------------------------------------------------------------
def deeponet_forward(x_branch, x_trunk, params):
    branch_layers = params["branch"]
    trunk_layers = params["trunk"]
    depth = len(trunk_layers)
    width = trunk_layers[0][0].shape[1]
    p = trunk_layers[-1][0].shape[1]
    B_b = x_branch.shape[0]
    B_t, n_trunk = x_trunk.shape
    assert depth >= 2
    assert n_trunk == 1, "kernel specializes the n_trunk == 1 input layer to a VPU multiply"

    # Branch MLP is independent of the trunk grid axis -> compute it once here.
    branch_out = branch_forward(x_branch.astype(jnp.float32), branch_layers)

    wt, cols, rw, rp = pack_trunk_params(trunk_layers, width, p, depth)
    branch_out = jnp.pad(branch_out, ((0, 0), (0, rp - p)))     # (B_b, rp); pad cols are 0

    tn, bt_pad = _trunk_tiling(B_t)
    # Trunk coords kept in f32; fed as a lane-dense (1, B_t_padded) row.
    xt_row = jnp.pad(x_trunk.astype(jnp.float32).reshape(1, B_t),
                     ((0, 0), (0, bt_pad - B_t)))
    bias = jnp.asarray(params["bias"], jnp.float32).reshape(1, 1)

    kernel = functools.partial(deeponet_kernel, width, rw, rp, depth)
    grid = (bt_pad // tn,)

    out = pl.pallas_call(
        kernel,
        out_shape=jax.ShapeDtypeStruct((B_b, bt_pad), jnp.float32),
        grid_spec=pltpu.PrefetchScalarGridSpec(
            num_scalar_prefetch=0,
            grid=grid,
            in_specs=[
                pl.BlockSpec((B_b, rp), lambda j: (0, 0)),          # precomputed branch out
                pl.BlockSpec((1, tn), lambda j: (0, j)),            # trunk coord tile (row)
                pl.BlockSpec(wt.shape, lambda j: (0, 0)),           # packed transposed weights
                pl.BlockSpec(cols.shape, lambda j: (0, 0)),         # packed column params
                pl.BlockSpec(memory_space=pltpu.MemorySpace.SMEM),  # scalar output bias
            ],
            out_specs=pl.BlockSpec((B_b, tn), lambda j: (0, j)),
        ),
        compiler_params=pltpu.CompilerParams(
            dimension_semantics=("parallel",)),   # shards trunk tiles across v7x's 2 TCs
    )(branch_out, xt_row, wt, cols, bias)

    return out[:, :B_t]


# ---------------------------------------------------------------------------
# Reference (pure JAX, mirrors the PyTorch module) + init.
# ---------------------------------------------------------------------------
def reference_forward(x_branch, x_trunk, params):
    def mlp(x, layers, final_act):
        h = x
        for W, b in layers[:-1]:
            h = jnp.tanh(h @ W + b)
        W, b = layers[-1]
        h = h @ W + b
        return jnp.maximum(h, 0.0) if final_act else h

    branch_out = mlp(x_branch, params["branch"], final_act=False)
    trunk_out = mlp(x_trunk, params["trunk"], final_act=True)
    return branch_out @ trunk_out.T + params["bias"][0]


def init_params(key, n_branch, n_trunk, width, depth, p):
    def lin(k, fan_in, fan_out):
        bound = 1.0 / (fan_in ** 0.5)
        kw, kb = jax.random.split(k)
        W = jax.random.uniform(kw, (fan_in, fan_out), jnp.float32, -bound, bound)
        b = jax.random.uniform(kb, (1, fan_out), jnp.float32, -bound, bound)
        return W, b

    def mlp_params(k, sizes):
        ks = jax.random.split(k, len(sizes) - 1)
        return [lin(ki, fi, fo) for ki, fi, fo in zip(ks, sizes[:-1], sizes[1:])]

    kb, kt = jax.random.split(key)
    sizes_b = [n_branch] + [width] * (depth - 1) + [p]
    sizes_t = [n_trunk] + [width] * (depth - 1) + [p]
    return {"branch": mlp_params(kb, sizes_b),
            "trunk": mlp_params(kt, sizes_t),
            "bias": jnp.ones((1,), jnp.float32)}   # nn.Parameter(torch.ones((1,)))


if __name__ == "__main__":
    # DeepONet config: n_branch=16, n_trunk=1 (default), width=32, depth=3, p=16
    n_branch, n_trunk, width, depth, p = 16, 1, 32, 3, 16
    B_branch, B_trunk = 8, 256          # 2 lane-dense trunk tiles of 128 query points

    key = jax.random.PRNGKey(0)
    k_params, k_xb, k_xt = jax.random.split(key, 3)

    params = init_params(k_params, n_branch, n_trunk, width, depth, p)
    x_branch = jax.random.normal(k_xb, (B_branch, n_branch), jnp.float32)
    x_trunk = jax.random.normal(k_xt, (B_trunk, n_trunk), jnp.float32)

    out = jax.block_until_ready(deeponet_forward(x_branch, x_trunk, params))
    ref = reference_forward(x_branch, x_trunk, params)
    assert out.shape == (B_branch, B_trunk)
    assert jnp.allclose(out, ref, atol=1e-5, rtol=1e-5), \
        f"mismatch vs reference: max abs err {float(jnp.max(jnp.abs(out - ref)))}"

    # Ragged trunk batch exercises the pad-to-128 path (stores stay unmasked).
    x_trunk2 = jax.random.normal(k_xt, (200, n_trunk), jnp.float32)
    out2 = jax.block_until_ready(deeponet_forward(x_branch, x_trunk2, params))
    ref2 = reference_forward(x_branch, x_trunk2, params)
    assert out2.shape == (B_branch, 200)
    assert jnp.allclose(out2, ref2, atol=1e-5, rtol=1e-5), "ragged-batch mismatch vs reference"

    print("KERNEL_OK")
</pallas_src>

<mosaic_0001>
module attributes {stable_mosaic.version = 11 : i64} {
  func.func @deeponet_kernel(%arg0: i32, %arg1: memref<8x16xf32, #tpu.memory_space<vmem>>, %arg2: memref<1x128xf32, #tpu.memory_space<vmem>>, %arg3: memref<48x32xf32, #tpu.memory_space<vmem>>, %arg4: memref<32x4xf32, #tpu.memory_space<vmem>>, %arg5: memref<1x1xf32, #tpu.memory_space<smem>>, %arg6: memref<8x128xf32, #tpu.memory_space<vmem>>) attributes {dimension_semantics = [#tpu.dimension_semantics<parallel>], iteration_bounds = array<i64: 2>, scalar_prefetch = 0 : i64, scratch_operands = 0 : i64, tpu.core_type = #tpu.core_type<tc>, window_params = [{pipeline_mode = #tpu.pipeline_mode<synchronous>, transform_indices = @transform_0, window_bounds = array<i64: 8, 16>}, {transform_indices = @transform_1, window_bounds = array<i64: 1, 128>}, {pipeline_mode = #tpu.pipeline_mode<synchronous>, transform_indices = @transform_2, window_bounds = array<i64: 48, 32>}, {pipeline_mode = #tpu.pipeline_mode<synchronous>, transform_indices = @transform_3, window_bounds = array<i64: 32, 4>}, {transform_indices = @transform_4, window_bounds = array<i64: 1, 1>}, {transform_indices = @transform_5, window_bounds = array<i64: 8, 128>}]} {
    %c0 = arith.constant 0 : index
    %c0_0 = arith.constant 0 : index
    %0 = vector.load %arg4[%c0, %c0_0] : memref<32x4xf32, #tpu.memory_space<vmem>>, vector<32x4xf32>
    %c0_1 = arith.constant 0 : index
    %c0_2 = arith.constant 0 : index
    %1 = vector.load %arg2[%c0_1, %c0_2] : memref<1x128xf32, #tpu.memory_space<vmem>>, vector<1x128xf32>
    %2 = vector.extract_strided_slice %0 {offsets = [0, 0], sizes = [32, 1], strides = [1, 1]} : vector<32x4xf32> to vector<32x1xf32>
    %3 = vector.extract_strided_slice %0 {offsets = [0, 1], sizes = [32, 1], strides = [1, 1]} : vector<32x4xf32> to vector<32x1xf32>
    %4 = vector.broadcast %2 : vector<32x1xf32> to vector<32x128xf32>
    %5 = vector.broadcast %1 : vector<1x128xf32> to vector<32x128xf32>
    %6 = arith.mulf %4, %5 : vector<32x128xf32>
    %7 = vector.broadcast %3 : vector<32x1xf32> to vector<32x128xf32>
    %8 = arith.addf %6, %7 : vector<32x128xf32>
    %9 = math.tanh %8 : vector<32x128xf32>
    %c0_3 = arith.constant 0 : index
    %c0_4 = arith.constant 0 : index
    %10 = vector.load %arg3[%c0_3, %c0_4] : memref<48x32xf32, #tpu.memory_space<vmem>>, vector<32x32xf32>
    %11 = vector.extract_strided_slice %0 {offsets = [0, 2], sizes = [32, 1], strides = [1, 1]} : vector<32x4xf32> to vector<32x1xf32>
    %cst = arith.constant dense<0.000000e+00> : vector<32x128xf32>
    %12 = tpu.matmul %10, %9, %cst {dimension_numbers = #tpu.dot_dimension_numbers<[1], [0], [0], [1], [0, 0, 1, 1], [], []>} : vector<32x32xf32>, vector<32x128xf32>, vector<32x128xf32> -> vector<32x128xf32>
    %13 = vector.broadcast %11 : vector<32x1xf32> to vector<32x128xf32>
    %14 = arith.addf %12, %13 : vector<32x128xf32>
    %15 = math.tanh %14 : vector<32x128xf32>
    %c32 = arith.constant 32 : index
    %c0_5 = arith.constant 0 : index
    %16 = vector.load %arg3[%c32, %c0_5] : memref<48x32xf32, #tpu.memory_space<vmem>>, vector<16x32xf32>
    %17 = vector.extract_strided_slice %0 {offsets = [0, 3], sizes = [16, 1], strides = [1, 1]} : vector<32x4xf32> to vector<16x1xf32>
    %cst_6 = arith.constant dense<0.000000e+00> : vector<16x128xf32>
    %18 = tpu.matmul %16, %15, %cst_6 {dimension_numbers = #tpu.dot_dimension_numbers<[1], [0], [0], [1], [0, 0, 1, 1], [], []>} : vector<16x32xf32>, vector<32x128xf32>, vector<16x128xf32> -> vector<16x128xf32>
    %19 = vector.broadcast %17 : vector<16x1xf32> to vector<16x128xf32>
    %20 = arith.addf %18, %19 : vector<16x128xf32>
    %cst_7 = arith.constant 0.000000e+00 : f32
    %21 = vector.broadcast %cst_7 : f32 to vector<16x128xf32>
    %22 = arith.maximumf %20, %21 : vector<16x128xf32>
    %c0_8 = arith.constant 0 : index
    %c0_9 = arith.constant 0 : index
    %23 = vector.load %arg1[%c0_8, %c0_9] : memref<8x16xf32, #tpu.memory_space<vmem>>, vector<8x16xf32>
    %cst_10 = arith.constant dense<0.000000e+00> : vector<8x128xf32>
    %24 = tpu.matmul %23, %22, %cst_10 {dimension_numbers = #tpu.dot_dimension_numbers<[1], [0], [0], [1], [0, 0, 1, 1], [], []>} : vector<8x16xf32>, vector<16x128xf32>, vector<8x128xf32> -> vector<8x128xf32>
    %c0_11 = arith.constant 0 : index
    %c0_12 = arith.constant 0 : index
    %25 = memref.load %arg5[%c0_11, %c0_12] : memref<1x1xf32, #tpu.memory_space<smem>>
    %26 = vector.broadcast %25 : f32 to vector<8x128xf32>
    %27 = arith.addf %24, %26 : vector<8x128xf32>
    %c0_13 = arith.constant 0 : index
    %c0_14 = arith.constant 0 : index
    %28 = vector.load %arg6[%c0_13, %c0_14] : memref<8x128xf32, #tpu.memory_space<vmem>>, vector<8x128xf32>
    tpu.vector_store %arg6[%c0_13, %c0_14], %27 {strides = array<i32>} : memref<8x128xf32, #tpu.memory_space<vmem>>, vector<8x128xf32>,
    return
  }
  func.func @transform_0(%arg0: i32) -> (i32, i32) {
    %c0_i32 = arith.constant 0 : i32
    %c0_i32_0 = arith.constant 0 : i32
    %c0_i32_1 = arith.constant 0 : i32
    return %c0_i32, %c0_i32_0 : i32, i32
  }
  func.func @transform_1(%arg0: i32) -> (i32, i32) {
    %c0_i32 = arith.constant 0 : i32
    %c0_i32_0 = arith.constant 0 : i32
    return %c0_i32, %arg0 : i32, i32
  }
  func.func @transform_2(%arg0: i32) -> (i32, i32) {
    %c0_i32 = arith.constant 0 : i32
    %c0_i32_0 = arith.constant 0 : i32
    %c0_i32_1 = arith.constant 0 : i32
    return %c0_i32, %c0_i32_0 : i32, i32
  }
  func.func @transform_3(%arg0: i32) -> (i32, i32) {
    %c0_i32 = arith.constant 0 : i32
    %c0_i32_0 = arith.constant 0 : i32
    %c0_i32_1 = arith.constant 0 : i32
    return %c0_i32, %c0_i32_0 : i32, i32
  }
  func.func @transform_4(%arg0: i32) -> (i32, i32) {
    %c0_i32 = arith.constant 0 : i32
    %c0_i32_0 = arith.constant 0 : i32
    %c0_i32_1 = arith.constant 0 : i32
    return %c0_i32, %c0_i32_0 : i32, i32
  }
  func.func @transform_5(%arg0: i32) -> (i32, i32) {
    %c0_i32 = arith.constant 0 : i32
    %c0_i32_0 = arith.constant 0 : i32
    return %c0_i32, %arg0 : i32, i32
  }
}

</mosaic_0001>

<llo_original>
// kernel: tpu_custom_call.1
$region0: #{tpu_custom_call.1}
  #allocation0 [shape = 'u32[]', space=smem, size = 0x4, offset = 0x4, fixed_abs, tag = 'smem constant byte address 0x4 - core index']
  #allocation1 [shape = 'u32[144,128]{1,0:T(1,128)}', space=vmem, size = 0x12000, scoped, tag = 'internal scratch']
  #allocation2 [shape = 'f32[1,1]{1,0:T(1,128)S(6)}', space=smem, size = 0x200, scoped, tag = 'scoped memory for tpu_custom_call.1']
  %s0 = inlined_call_operand.vmem [shape: f32[8,16], index: 0, kind: input, shape index: {}]
  %s1 = inlined_call_operand.vmem [shape: f32[1,256], index: 1, kind: input, shape index: {}]
  %s2 = inlined_call_operand.vmem [shape: f32[48,32], index: 2, kind: input, shape index: {}]
  %s3 = inlined_call_operand.vmem [shape: f32[32,4], index: 3, kind: input, shape index: {}]
  %s4 = inlined_call_operand.<no memory space> [shape: f32[1,1], index: 4, kind: input, shape index: {}]
  %s5 = inlined_call_operand.hbm [shape: f32[8,256], index: 5, kind: output, shape index: {}]
  %s6 = sld [smem:[#allocation0]]
  $region53: #{tpu_custom_call.1} parent=0
    _
  %s8 = ssub.s32 1, %s6
  %s9 = scalar_select 0, %s8, %s6
  %10 = sst [smem:[#allocation2]] %s4
  $region1: #{tpu_custom_call.1} parent=0
    #allocation3 [shape = 'u8[8192]{0}', space=vmem, size = 0x2000, scoped, tag = 'output window, operand 0']
    #allocation4 [shape = 's32[2]{0}', space=sflag, size = 0x8, scoped, tag = 'scoped memory for tpu_custom_call.1']
    %11 = vsyncpa [#allocation4], 0
    %s12 = scalar_lea.sflag [#allocation4], 1
    %13 = vsyncpa %s12, 0
    loop: start=0, step=1, limit=4
    $region2: #{tpu_custom_call.1} parent=1 // loop_pre_header
      _
    $region3: #{tpu_custom_call.1} parent=1 // loop_header
      %s15 = sphi 0, %s19
      %p16 = scmp.ge.s32.totalorder %s15, 4
      %s23 = sphi 0, %s23
      %s25 = sphi 0, %s23
      %s26 = sphi 0, %s25
      %s40 = sphi 0, %s26
      %s46 = sphi 0, %s48
      %s49 = sphi 0, %s46
      %s50 = sphi 0, %s49
      %s66 = sphi 0, %s50
      %s70 = sphi 0, %s70
      %s72 = sphi 0, %s70
      %s73 = sphi 0, %s72
      %s87 = sphi 0, %s73
      %s91 = sphi 0, %s91
      %s93 = sphi 0, %s91
      %s94 = sphi 0, %s93
      %s108 = sphi 0, %s94
      %s112 = sphi 0, %s112
      %s114 = sphi 0, %s112
      %s115 = sphi 0, %s114
      %s129 = sphi 0, %s115
      %s135 = sphi 0, %s137
      %s138 = sphi 0, %s135
      %s139 = sphi 0, %s138
      %s155 = sphi 0, %s139
    $region4: #{tpu_custom_call.1} parent=1 // loop_header_branch
      %18 = sbr.rel (%p16) target = $region8
    $region5: #{tpu_custom_call.1} parent=1 // loop_body
      %s20 = ssub.s32 %s15, 1
      %s21 = ssub.s32 %s15, 2
      %s22 = sadd.s32 %s15, 1
      %s24 = sadd.s32 %s23, 1
      %p27 = scmp.eq.s32.totalorder %s15, 1
      %p28 = scmp.ne.s32.totalorder %s23, %s25
      %p29 = scmp.eq.s32.totalorder %s15, 0
      %p30 = por %p28, %p29
      %p31 = scmp.ne.s32.totalorder %s23, %s25
      %p32 = scmp.eq.s32.totalorder %s20, 1
      %p33 = por %p31, %p32
      %p34 = scmp.ne.s32.totalorder %s25, %s26
      %p35 = scmp.eq.s32.totalorder %s20, 0
      %p36 = por %p34, %p35
      %p37 = scmp.ne.s32.totalorder %s25, %s26
      %p38 = scmp.eq.s32.totalorder %s21, 1
      %p39 = por %p37, %p38
      %p41 = scmp.ne.s32.totalorder %s26, %s40
      %p42 = scmp.eq.s32.totalorder %s21, 0
      %p43 = por %p41, %p42
      %s44 = ssub.s32 %s15, %s22
      %p45 = scmp.eq.s32.totalorder %s44, 0
      %s47 = sadd.s32 %s46, 1
      %s48 = scalar_select %p45, %s46, %s47
      %p51 = pneg %p45
      %p52 = scmp.eq.s32.totalorder %s15, 1
      %p53 = por %p51, %p52
      %p54 = scmp.ne.s32.totalorder %s46, %s49
      %p55 = scmp.eq.s32.totalorder %s15, 0
      %p56 = por %p54, %p55
      %p57 = scmp.ne.s32.totalorder %s46, %s49
      %p58 = scmp.eq.s32.totalorder %s20, 1
      %p59 = por %p57, %p58
      %p60 = scmp.ne.s32.totalorder %s49, %s50
      %p61 = scmp.eq.s32.totalorder %s20, 0
      %p62 = por %p60, %p61
      %p63 = scmp.ne.s32.totalorder %s49, %s50
      %p64 = scmp.eq.s32.totalorder %s21, 1
      %p65 = por %p63, %p64
      %p67 = scmp.ne.s32.totalorder %s50, %s66
      %p68 = scmp.eq.s32.totalorder %s21, 0
      %p69 = por %p67, %p68
      %s71 = sadd.s32 %s70, 1
      %p74 = scmp.eq.s32.totalorder %s15, 1
      %p75 = scmp.ne.s32.totalorder %s70, %s72
      %p76 = scmp.eq.s32.totalorder %s15, 0
      %p77 = por %p75, %p76
      %p78 = scmp.ne.s32.totalorder %s70, %s72
      %p79 = scmp.eq.s32.totalorder %s20, 1
      %p80 = por %p78, %p79
      %p81 = scmp.ne.s32.totalorder %s72, %s73
      %p82 = scmp.eq.s32.totalorder %s20, 0
      %p83 = por %p81, %p82
      %p84 = scmp.ne.s32.totalorder %s72, %s73
      %p85 = scmp.eq.s32.totalorder %s21, 1
      %p86 = por %p84, %p85
      %p88 = scmp.ne.s32.totalorder %s73, %s87
      %p89 = scmp.eq.s32.totalorder %s21, 0
      %p90 = por %p88, %p89
      %s92 = sadd.s32 %s91, 1
      %p95 = scmp.eq.s32.totalorder %s15, 1
      %p96 = scmp.ne.s32.totalorder %s91, %s93
      %p97 = scmp.eq.s32.totalorder %s15, 0
      %p98 = por %p96, %p97
      %p99 = scmp.ne.s32.totalorder %s91, %s93
      %p100 = scmp.eq.s32.totalorder %s20, 1
      %p101 = por %p99, %p100
      %p102 = scmp.ne.s32.totalorder %s93, %s94
      %p103 = scmp.eq.s32.totalorder %s20, 0
      %p104 = por %p102, %p103
      %p105 = scmp.ne.s32.totalorder %s93, %s94
      %p106 = scmp.eq.s32.totalorder %s21, 1
      %p107 = por %p105, %p106
      %p109 = scmp.ne.s32.totalorder %s94, %s108
      %p110 = scmp.eq.s32.totalorder %s21, 0
      %p111 = por %p109, %p110
      %s113 = sadd.s32 %s112, 1
      %p116 = scmp.eq.s32.totalorder %s15, 1
      %p117 = scmp.ne.s32.totalorder %s112, %s114
      %p118 = scmp.eq.s32.totalorder %s15, 0
      %p119 = por %p117, %p118
      %p120 = scmp.ne.s32.totalorder %s112, %s114
      %p121 = scmp.eq.s32.totalorder %s20, 1
      %p122 = por %p120, %p121
      %p123 = scmp.ne.s32.totalorder %s114, %s115
      %p124 = scmp.eq.s32.totalorder %s20, 0
      %p125 = por %p123, %p124
      %p126 = scmp.ne.s32.totalorder %s114, %s115
      %p127 = scmp.eq.s32.totalorder %s21, 1
      %p128 = por %p126, %p127
      %p130 = scmp.ne.s32.totalorder %s115, %s129
      %p131 = scmp.eq.s32.totalorder %s21, 0
      %p132 = por %p130, %p131
      %s133 = ssub.s32 %s15, %s22
      %p134 = scmp.eq.s32.totalorder %s133, 0
      %s136 = sadd.s32 %s135, 1
      %s137 = scalar_select %p134, %s135, %s136
      %p140 = pneg %p134
      %p141 = scmp.eq.s32.totalorder %s15, 1
      %p142 = por %p140, %p141
      %p143 = scmp.ne.s32.totalorder %s135, %s138
      %p144 = scmp.eq.s32.totalorder %s15, 0
      %p145 = por %p143, %p144
      %p146 = scmp.ne.s32.totalorder %s135, %s138
      %p147 = scmp.eq.s32.totalorder %s20, 1
      %p148 = por %p146, %p147
      %p149 = scmp.ne.s32.totalorder %s138, %s139
      %p150 = scmp.eq.s32.totalorder %s20, 0
      %p151 = por %p149, %p150
      %p152 = scmp.ne.s32.totalorder %s138, %s139
      %p153 = scmp.eq.s32.totalorder %s21, 1
      %p154 = por %p152, %p153
      %p156 = scmp.ne.s32.totalorder %s139, %s155
      %p157 = scmp.eq.s32.totalorder %s21, 0
      %p158 = por %p156, %p157
      %p159 = scmp.le.s32.totalorder 1, %s15
      %p160 = scmp.lt.s32.totalorder %s15, 3
      %p161 = pnand %p159, %p160
      %p162 = pneg %p161
      // Predicated region
      $region9: #{tpu_custom_call.1} parent=5 // pred_check
        _
      $region10: #{tpu_custom_call.1} parent=5 // pred_check_branch
        %164 = sbr.rel (%p161) target = $region12
      $region11: #{tpu_custom_call.1} parent=5 // pred_region
        %s165 = ssub.s32 %s15, 1
        // Predicated region
        $region13: #{tpu_custom_call.1} parent=11 // pred_check
          %p166 = pneg %p36
        $region14: #{tpu_custom_call.1} parent=11 // pred_check_branch
          %168 = sbr.rel (%p166) target = $region16
        $region15: #{tpu_custom_call.1} parent=11 // pred_region
          _
        $region16: #{tpu_custom_call.1} parent=11 // pred_fallthru
          _
        // Predicated region
        $region17: #{tpu_custom_call.1} parent=11 // pred_check
          %p169 = pneg %p83
        $region18: #{tpu_custom_call.1} parent=11 // pred_check_branch
          %171 = sbr.rel (%p169) target = $region20
        $region19: #{tpu_custom_call.1} parent=11 // pred_region
          _
        $region20: #{tpu_custom_call.1} parent=11 // pred_fallthru
          _
        // Predicated region
        $region21: #{tpu_custom_call.1} parent=11 // pred_check
          %p172 = pneg %p104
        $region22: #{tpu_custom_call.1} parent=11 // pred_check_branch
          %174 = sbr.rel (%p172) target = $region24
        $region23: #{tpu_custom_call.1} parent=11 // pred_region
          _
        $region24: #{tpu_custom_call.1} parent=11 // pred_fallthru
          _
        // Predicated region
        $region25: #{tpu_custom_call.1} parent=11 // pred_check
          %p175 = pneg %p125
        $region26: #{tpu_custom_call.1} parent=11 // pred_check_branch
          %177 = sbr.rel (%p175) target = $region28
        $region27: #{tpu_custom_call.1} parent=11 // pred_region
          _
        $region28: #{tpu_custom_call.1} parent=11 // pred_fallthru
          _
      $region12: #{tpu_custom_call.1} parent=5 // pred_fallthru
        _
      %p178 = scmp.lt.s32.totalorder %s15, 2
      // Predicated region
      $region29: #{tpu_custom_call.1} parent=5 // pred_check
        %p179 = pneg %p178
      $region30: #{tpu_custom_call.1} parent=5 // pred_check_branch
        %181 = sbr.rel (%p179) target = $region32
      $region31: #{tpu_custom_call.1} parent=5 // pred_region
        // Predicated region
        $region33: #{tpu_custom_call.1} parent=31 // pred_check
          %p182 = pneg %p56
        $region34: #{tpu_custom_call.1} parent=31 // pred_check_branch
          %184 = sbr.rel (%p182) target = $region36
        $region35: #{tpu_custom_call.1} parent=31 // pred_region
          %p185 = scmp.lt.s32.totalorder %s15, 1
          %s186 = scalar_select %p185, %s15, 1
          %s187 = scalar_lea.vmem %s1, %s186
        $region36: #{tpu_custom_call.1} parent=31 // pred_fallthru
          _
      $region32: #{tpu_custom_call.1} parent=5 // pred_fallthru
        _
      %p188 = scmp.le.s32.totalorder 1, %s15
      %p189 = scmp.lt.s32.totalorder %s15, 3
      %p190 = pnand %p188, %p189
      %p191 = pneg %p190
      // Predicated region
      $region37: #{tpu_custom_call.1} parent=5 // pred_check
        _
      $region38: #{tpu_custom_call.1} parent=5 // pred_check_branch
        %193 = sbr.rel (%p190) target = $region40
      $region39: #{tpu_custom_call.1} parent=5 // pred_region
        %s194 = ssub.s32 %s15, 1
        %p195 = pneg %p36
        %p196 = pneg %p33
        %p197 = scmp.lt.s32.totalorder %s20, 1
        %s198 = scalar_select %p197, %s20, 1
        %s199 = scalar_lea.vmem %s1, %s198
        %p200 = pneg %p62
        %p201 = pneg %p59
        %p202 = pneg %p83
        %p203 = pneg %p80
        %p204 = pneg %p104
        %p205 = pneg %p101
        %p206 = pneg %p125
        %p207 = pneg %p122
        %p208 = pneg %p151
        %p209 = pneg %p148
        %s210 = sand.u32 %s138, 1
        %s211 = scalar_lea.sflag [#allocation4], %s210
        %s212 = sand.u32 %s138, 1
        %s213 = smul.addr %s212, 8
        %s214 = scalar_lea.vmem [#allocation3], %s213
        %p215 = scmp.lt.s32.totalorder %s20, 1
        %s216 = scalar_select %p215, %s20, 1
        %s217 = scalar_lea.vmem %s1, %s216
        %v218 = vld [vmem:[%s3] sm:$0xff]
        %v219 = vld [vmem:[%s3 + $0x8] sm:$0xff]
        %v220 = vld [vmem:[%s3 + $0x10] sm:$0xff]
        %v221 = vld [vmem:[%s3 + $0x18] sm:$0xff]
        %v222 = vld [vmem:[%s217] sm:$0x1]
        %224 = vset.pattern.permute.xlu0 0
        %225 = vperm.xlu0 %224, %v218
        %v226 = vpop.permute.xlu0 %225
        %229 = vset.pattern.permute.xlu0 0
        %230 = vperm.xlu0 %229, %v219
        %v231 = vpop.permute.xlu0 %230
        %234 = vset.pattern.permute.xlu0 0
        %235 = vperm.xlu0 %234, %v220
        %v236 = vpop.permute.xlu0 %235
        %239 = vset.pattern.permute.xlu0 0
        %240 = vperm.xlu0 %239, %v221
        %v241 = vpop.permute.xlu0 %240
        %v244 = vlaneseq
        %v245 = vshrl.u32 %v244, 7
        %v246 = vsub.s32 0, %v245
        %v247 = vrot.slane %v222, %v246
        %v249 = vmul.f32 %v226, %v247
        %v250 = vmul.f32 %v231, %v247
        %v251 = vmul.f32 %v236, %v247
        %v252 = vmul.f32 %v241, %v247
        %253 = vset.pattern.permute.xlu0 1
        %254 = vperm.xlu0 %253, %v218
        %v255 = vpop.permute.xlu0 %254
        %257 = vset.pattern.permute.xlu0 1
        %258 = vperm.xlu0 %257, %v219
        %v259 = vpop.permute.xlu0 %258
        %261 = vset.pattern.permute.xlu0 1
        %262 = vperm.xlu0 %261, %v220
        %v263 = vpop.permute.xlu0 %262
        %265 = vset.pattern.permute.xlu0 1
        %266 = vperm.xlu0 %265, %v221
        %v267 = vpop.permute.xlu0 %266
        %v269 = vadd.f32 %v249, %v255
        %v270 = vadd.f32 %v250, %v259
        %v271 = vadd.f32 %v251, %v263
        %v272 = vadd.f32 %v252, %v267
        %v273 = vtanh.pop %v269
        %v274 = vtanh.pop %v270
        %v275 = vtanh.pop %v271
        %v276 = vtanh.pop %v272
        %v277 = vld [vmem:[%s2] sm:$0xff]
        %v278 = vld [vmem:[%s2 + $0x8] sm:$0xff]
        %v279 = vld [vmem:[%s2 + $0x10] sm:$0xff]
        %v280 = vld [vmem:[%s2 + $0x18] sm:$0xff]
        %281 = vset.pattern.permute.xlu0 2
        %282 = vperm.xlu0 %281, %v218
        %v283 = vpop.permute.xlu0 %282
        %285 = vset.pattern.permute.xlu0 2
        %286 = vperm.xlu0 %285, %v219
        %v287 = vpop.permute.xlu0 %286
        %289 = vset.pattern.permute.xlu0 2
        %290 = vperm.xlu0 %289, %v220
        %v291 = vpop.permute.xlu0 %290
        %293 = vset.pattern.permute.xlu0 2
        %294 = vperm.xlu0 %293, %v221
        %v295 = vpop.permute.xlu0 %294
        %vm297 = vcmask 261120
        %v299 = vsel %vm297, %v277, 0
        %v302 = vsel %vm297, %v278, 0
        %v305 = vsel %vm297, %v279, 0
        %v308 = vsel %vm297, %v280, 0
        %310 = vmatprep.subr.mxu0 0.0
        %311 = vmatpush1.msra.mxu0 0.0
        %312 = vmatprep.subr.mxu0 0.0
        %313 = vmatpush1.msra.mxu0 0.0
        %314 = vmatprep.subr.mxu0 0.0
        %315 = vmatpush1.msra.mxu0 0.0
        %316 = vmatprep.subr.mxu0 0.0
        %317 = vmatpush1.msra.mxu0 0.0
        %318 = vmatprep.subr.mxu0 0.0
        %319 = vmatpush1.msra.mxu0 0.0
        %320 = vmatprep.subr.mxu0 0.0
        %321 = vmatpush1.msra.mxu0 0.0
        %322 = vmatprep.subr.mxu0 0.0
        %323 = vmatpush1.msra.mxu0 0.0
        %324 = vmatprep.subr.mxu0 0.0
        %325 = vmatpush1.msra.mxu0 0.0
        %326 = vmatprep.subr.mxu0 0.0
        %327 = vmatpush1.msra.mxu0 0.0
        %328 = vmatprep.subr.mxu0 0.0
        %329 = vmatpush1.msra.mxu0 0.0
        %330 = vmatprep.subr.mxu0 0.0
        %331 = vmatpush1.msra.mxu0 0.0
        %332 = vmatprep.subr.mxu0 0.0
        %333 = vmatpush1.msra.mxu0 0.0
        %334 = vmatprep.subr.mxu0 0.0
        %335 = vmatpush1.msra.mxu0 %v276
        %336 = vmatprep.subr.mxu0 0.0
        %337 = vmatpush1.msra.mxu0 %v275
        %338 = vmatprep.subr.mxu0 0.0
        %339 = vmatpush1.msra.mxu0 %v274
        %340 = vmatprep.subr.mxu0 0.0
        %341 = vmatpush1.msra.mxu0 %v273
        %342 = vmatprep.subr.mxu0 0.0
        %343 = vmatpush2.msra.mxu0 0.0
        %344 = vmatprep.subr.mxu0 0.0
        %345 = vmatpush2.msra.mxu0 0.0
        %346 = vmatprep.subr.mxu0 0.0
        %347 = vmatpush2.msra.mxu0 0.0
        %348 = vmatprep.subr.mxu0 0.0
        %349 = vmatpush2.msra.mxu0 0.0
        %350 = vmatprep.subr.mxu0 0.0
        %351 = vmatpush2.msra.mxu0 0.0
        %352 = vmatprep.subr.mxu0 0.0
        %353 = vmatpush2.msra.mxu0 0.0
        %354 = vmatprep.subr.mxu0 0.0
        %355 = vmatpush2.msra.mxu0 0.0
        %356 = vmatprep.subr.mxu0 0.0
        %357 = vmatpush2.msra.mxu0 0.0
        %358 = vmatprep.subr.mxu0 0.0
        %359 = vmatpush2.msra.mxu0 0.0
        %360 = vmatprep.subr.mxu0 0.0
        %361 = vmatpush2.msra.mxu0 0.0
        %362 = vmatprep.subr.mxu0 0.0
        %363 = vmatpush2.msra.mxu0 0.0
        %364 = vmatprep.subr.mxu0 0.0
        %365 = vmatpush2.msra.mxu0 0.0
        %366 = vmatprep.subr.mxu0 0.0
        %367 = vmatpush2.msra.mxu0 0.0
        %368 = vmatprep.subr.mxu0 0.0
        %369 = vmatpush2.msra.mxu0 0.0
        %370 = vmatprep.subr.mxu0 0.0
        %371 = vmatpush2.msra.mxu0 0.0
        %372 = vmatprep.subr.mxu0 0.0
        %373 = vmatpush2.msra.mxu0 0.0
        %374 = vmatprep.mubr.f32.mxu0 0.0
        %375 = vmatmul.mubr.f32.gmra.mxu0 %v299
        %v376 = vpop.f32.mrf.mxu0
        %v377 = vadd.f32 %v283, %v376
        %v378 = vpop.f32.mrf.mxu0
        %379 = vmatprep.mubr.f32.mxu0 0.0
        %380 = vmatmul.mubr.f32.gmra.mxu0 %v302
        %v381 = vpop.f32.mrf.mxu0
        %v382 = vadd.f32 %v287, %v381
        %v383 = vpop.f32.mrf.mxu0
        %384 = vmatprep.mubr.f32.mxu0 0.0
        %385 = vmatmul.mubr.f32.gmra.mxu0 %v305
        %v386 = vpop.f32.mrf.mxu0
        %v387 = vadd.f32 %v291, %v386
        %v388 = vpop.f32.mrf.mxu0
        %389 = vmatprep.mubr.f32.mxu0 0.0
        %390 = vmatmul.mubr.f32.gmra.mxu0 %v308
        %v391 = vpop.f32.mrf.mxu0
        %v392 = vadd.f32 %v295, %v391
        %v393 = vpop.f32.mrf.mxu0
        %394 = vdwg.mxu0
        %v395 = vtanh.pop %v377
        %v396 = vtanh.pop %v382
        %v397 = vtanh.pop %v387
        %v398 = vtanh.pop %v392
        %v399 = vld [vmem:[%s2 + $0x20] sm:$0xff]
        %v400 = vld [vmem:[%s2 + $0x28] sm:$0xff]
        %401 = vset.pattern.permute.xlu0 3
        %402 = vperm.xlu0 %401, %v218
        %v403 = vpop.permute.xlu0 %402
        %405 = vset.pattern.permute.xlu0 3
        %406 = vperm.xlu0 %405, %v219
        %v407 = vpop.permute.xlu0 %406
        %v410 = vsel %vm297, %v399, 0
        %v413 = vsel %vm297, %v400, 0
        %415 = vmatprep.subr.mxu0 0.0
        %416 = vmatpush1.msra.mxu0 0.0
        %417 = vmatprep.subr.mxu0 0.0
        %418 = vmatpush1.msra.mxu0 0.0
        %419 = vmatprep.subr.mxu0 0.0
        %420 = vmatpush1.msra.mxu0 0.0
        %421 = vmatprep.subr.mxu0 0.0
        %422 = vmatpush1.msra.mxu0 0.0
        %423 = vmatprep.subr.mxu0 0.0
        %424 = vmatpush1.msra.mxu0 0.0
        %425 = vmatprep.subr.mxu0 0.0
        %426 = vmatpush1.msra.mxu0 0.0
        %427 = vmatprep.subr.mxu0 0.0
        %428 = vmatpush1.msra.mxu0 0.0
        %429 = vmatprep.subr.mxu0 0.0
        %430 = vmatpush1.msra.mxu0 0.0
        %431 = vmatprep.subr.mxu0 0.0
        %432 = vmatpush1.msra.mxu0 0.0
        %433 = vmatprep.subr.mxu0 0.0
        %434 = vmatpush1.msra.mxu0 0.0
        %435 = vmatprep.subr.mxu0 0.0
        %436 = vmatpush1.msra.mxu0 0.0
        %437 = vmatprep.subr.mxu0 0.0
        %438 = vmatpush1.msra.mxu0 0.0
        %439 = vmatprep.subr.mxu0 0.0
        %440 = vmatpush1.msra.mxu0 %v398
        %441 = vmatprep.subr.mxu0 0.0
        %442 = vmatpush1.msra.mxu0 %v397
        %443 = vmatprep.subr.mxu0 0.0
        %444 = vmatpush1.msra.mxu0 %v396
        %445 = vmatprep.subr.mxu0 0.0
        %446 = vmatpush1.msra.mxu0 %v395
        %447 = vmatprep.subr.mxu0 0.0
        %448 = vmatpush2.msra.mxu0 0.0
        %449 = vmatprep.subr.mxu0 0.0
        %450 = vmatpush2.msra.mxu0 0.0
        %451 = vmatprep.subr.mxu0 0.0
        %452 = vmatpush2.msra.mxu0 0.0
        %453 = vmatprep.subr.mxu0 0.0
        %454 = vmatpush2.msra.mxu0 0.0
        %455 = vmatprep.subr.mxu0 0.0
        %456 = vmatpush2.msra.mxu0 0.0
        %457 = vmatprep.subr.mxu0 0.0
        %458 = vmatpush2.msra.mxu0 0.0
        %459 = vmatprep.subr.mxu0 0.0
        %460 = vmatpush2.msra.mxu0 0.0
        %461 = vmatprep.subr.mxu0 0.0
        %462 = vmatpush2.msra.mxu0 0.0
        %463 = vmatprep.subr.mxu0 0.0
        %464 = vmatpush2.msra.mxu0 0.0
        %465 = vmatprep.subr.mxu0 0.0
        %466 = vmatpush2.msra.mxu0 0.0
        %467 = vmatprep.subr.mxu0 0.0
        %468 = vmatpush2.msra.mxu0 0.0
        %469 = vmatprep.subr.mxu0 0.0
        %470 = vmatpush2.msra.mxu0 0.0
        %471 = vmatprep.subr.mxu0 0.0
        %472 = vmatpush2.msra.mxu0 0.0
        %473 = vmatprep.subr.mxu0 0.0
        %474 = vmatpush2.msra.mxu0 0.0
        %475 = vmatprep.subr.mxu0 0.0
        %476 = vmatpush2.msra.mxu0 0.0
        %477 = vmatprep.subr.mxu0 0.0
        %478 = vmatpush2.msra.mxu0 0.0
        %479 = vmatprep.mubr.f32.mxu0 0.0
        %480 = vmatmul.mubr.f32.gmra.mxu0 %v410
        %v481 = vpop.f32.mrf.mxu0
        %v482 = vadd.f32 %v403, %v481
        %v483 = vpop.f32.mrf.mxu0
        %484 = vmatprep.mubr.f32.mxu0 0.0
        %485 = vmatmul.mubr.f32.gmra.mxu0 %v413
        %v486 = vpop.f32.mrf.mxu0
        %v487 = vadd.f32 %v407, %v486
        %v488 = vpop.f32.mrf.mxu0
        %489 = vdwg.mxu0
        %v490 = vmax.f32 %v482, 0.0
        %v491 = vmax.f32 %v487, 0.0
        %v492 = vld [vmem:[%s0] sm:$0xff]
        %s493 = sld [smem:[#allocation2]]
        %v494 = vstv %s493
        %vm495 = vcmask 130048
        %v497 = vsel %vm495, %v492, 0
        %499 = vmatprep.subr.mxu0 0.0
        %500 = vmatpush1.msra.mxu0 0.0
        %501 = vmatprep.subr.mxu0 0.0
        %502 = vmatpush1.msra.mxu0 0.0
        %503 = vmatprep.subr.mxu0 0.0
        %504 = vmatpush1.msra.mxu0 0.0
        %505 = vmatprep.subr.mxu0 0.0
        %506 = vmatpush1.msra.mxu0 0.0
        %507 = vmatprep.subr.mxu0 0.0
        %508 = vmatpush1.msra.mxu0 0.0
        %509 = vmatprep.subr.mxu0 0.0
        %510 = vmatpush1.msra.mxu0 0.0
        %511 = vmatprep.subr.mxu0 0.0
        %512 = vmatpush1.msra.mxu0 0.0
        %513 = vmatprep.subr.mxu0 0.0
        %514 = vmatpush1.msra.mxu0 0.0
        %515 = vmatprep.subr.mxu0 0.0
        %516 = vmatpush1.msra.mxu0 0.0
        %517 = vmatprep.subr.mxu0 0.0
        %518 = vmatpush1.msra.mxu0 0.0
        %519 = vmatprep.subr.mxu0 0.0
        %520 = vmatpush1.msra.mxu0 0.0
        %521 = vmatprep.subr.mxu0 0.0
        %522 = vmatpush1.msra.mxu0 0.0
        %523 = vmatprep.subr.mxu0 0.0
        %524 = vmatpush1.msra.mxu0 0.0
        %525 = vmatprep.subr.mxu0 0.0
        %526 = vmatpush1.msra.mxu0 0.0
        %527 = vmatprep.subr.mxu0 0.0
        %528 = vmatpush1.msra.mxu0 %v491
        %529 = vmatprep.subr.mxu0 0.0
        %530 = vmatpush1.msra.mxu0 %v490
        %531 = vmatprep.subr.mxu0 0.0
        %532 = vmatpush2.msra.mxu0 0.0
        %533 = vmatprep.subr.mxu0 0.0
        %534 = vmatpush2.msra.mxu0 0.0
        %535 = vmatprep.subr.mxu0 0.0
        %536 = vmatpush2.msra.mxu0 0.0
        %537 = vmatprep.subr.mxu0 0.0
        %538 = vmatpush2.msra.mxu0 0.0
        %539 = vmatprep.subr.mxu0 0.0
        %540 = vmatpush2.msra.mxu0 0.0
        %541 = vmatprep.subr.mxu0 0.0
        %542 = vmatpush2.msra.mxu0 0.0
        %543 = vmatprep.subr.mxu0 0.0
        %544 = vmatpush2.msra.mxu0 0.0
        %545 = vmatprep.subr.mxu0 0.0
        %546 = vmatpush2.msra.mxu0 0.0
        %547 = vmatprep.subr.mxu0 0.0
        %548 = vmatpush2.msra.mxu0 0.0
        %549 = vmatprep.subr.mxu0 0.0
        %550 = vmatpush2.msra.mxu0 0.0
        %551 = vmatprep.subr.mxu0 0.0
        %552 = vmatpush2.msra.mxu0 0.0
        %553 = vmatprep.subr.mxu0 0.0
        %554 = vmatpush2.msra.mxu0 0.0
        %555 = vmatprep.subr.mxu0 0.0
        %556 = vmatpush2.msra.mxu0 0.0
        %557 = vmatprep.subr.mxu0 0.0
        %558 = vmatpush2.msra.mxu0 0.0
        %559 = vmatprep.subr.mxu0 0.0
        %560 = vmatpush2.msra.mxu0 0.0
        %561 = vmatprep.subr.mxu0 0.0
        %562 = vmatpush2.msra.mxu0 0.0
        %563 = vmatprep.mubr.f32.mxu0 0.0
        %564 = vmatmul.mubr.f32.gmra.mxu0 %v497
        %v565 = vpop.f32.mrf.mxu0
        %v566 = vadd.f32 %v494, %v565
        %v567 = vpop.f32.mrf.mxu0
        %568 = vdwg.mxu0
        %569 = vst [vmem:[%s214] sm:$0xff] %v566
        %s570 = sand.u32 %s138, 1
        %s571 = scalar_lea.sflag [#allocation4], %s570
        %s572 = sand.u32 %s138, 1
        %s573 = smul.addr %s572, 8
        %s574 = scalar_lea.vmem [#allocation3], %s573
        // Predicated region
        $region41: #{tpu_custom_call.1} parent=39 // pred_check
          %p575 = pneg %p148
        $region42: #{tpu_custom_call.1} parent=39 // pred_check_branch
          %577 = sbr.rel (%p575) target = $region44
        $region43: #{tpu_custom_call.1} parent=39 // pred_region
          %s579 = ssub.s32 128, 128
          %580 = vsyncadd %s571, %s579
          %s581 = smul.addr %s20, 128
          %s582 = scalar_lea.hbm %s5, %s581
          %s584 = sshll.u32 %s574, 4
          %s585 = int_to_ptr.vmem [resolvable:$true] %s584
          %587 = dma.vmem_to_hbm [thread:$0]  %s585, 128, %s582, %s571
        $region44: #{tpu_custom_call.1} parent=39 // pred_fallthru
          _
      $region40: #{tpu_custom_call.1} parent=5 // pred_fallthru
        _
      %p588 = scmp.le.s32.totalorder 2, %s15
      // Predicated region
      $region45: #{tpu_custom_call.1} parent=5 // pred_check
        %p589 = pneg %p588
      $region46: #{tpu_custom_call.1} parent=5 // pred_check_branch
        %591 = sbr.rel (%p589) target = $region48
      $region47: #{tpu_custom_call.1} parent=5 // pred_region
        %s592 = ssub.s32 %s15, 2
        // Predicated region
        $region49: #{tpu_custom_call.1} parent=47 // pred_check
          %p593 = pneg %p154
        $region50: #{tpu_custom_call.1} parent=47 // pred_check_branch
          %595 = sbr.rel (%p593) target = $region52
        $region51: #{tpu_custom_call.1} parent=47 // pred_region
          %s596 = sand.u32 %s139, 1
          %s597 = scalar_lea.sflag [#allocation4], %s596
          %s598 = sand.u32 %s139, 1
          %s599 = smul.addr %s598, 8
          %s600 = scalar_lea.vmem [#allocation3], %s599
          %601 = dma.done %s597, 128
        $region52: #{tpu_custom_call.1} parent=47 // pred_fallthru
          _
      $region48: #{tpu_custom_call.1} parent=5 // pred_fallthru
        _
    $region6: #{tpu_custom_call.1} parent=1 // loop_footer
      %s19 = sadd.s32 1, %s15
    $region7: #{tpu_custom_call.1} parent=1 // loop_footer_branch
      %14 = sbr.rel target = $region3
    $region8: #{tpu_custom_call.1} parent=1 // loop_exit
      _
    %602 = vsyncpa [#allocation4], 1
    %s603 = scalar_lea.sflag [#allocation4], 1
    %604 = vsyncpa %s603, 1

</llo_original>
